<compile_context>
chip_gen: v5e
topology: v5e:2x2
jax: 0.10.0
libtpu: 0.0.40
codegen_flags: <defaults>
</compile_context>

<pallas_src>
import functools
import math

import jax
import jax.numpy as jnp
from jax.experimental import pallas as pl
from jax.experimental.pallas import tpu as pltpu

_F32 = jnp.float32
_BF16 = jnp.bfloat16

# Scoped-VMEM budget: above the 16/32 MiB defaults so full weight blocks stay resident,
# below every target generation's physical VMEM (v5e/v6e: 128 MiB, v7x: 64 MiB).
_VMEM_LIMIT_BYTES = 48 * 1024 * 1024


def _round_up(x, m):
    return (x + m - 1) // m * m


def _pick_tile(n_tokens, want):
    """Largest token tile <= `want` that divides n_tokens; keep >=2 grid steps (v7x megacore)."""
    assert n_tokens % 8 == 0, "batch*seq must be a multiple of 8"
    tm = 8
    for cand in (512, 256, 128, 64, 32, 16, 8):
        if cand <= want and n_tokens % cand == 0:
            tm = cand
            break
    while n_tokens // tm < 2 and tm > 8 and n_tokens % (tm // 2) == 0:
        tm //= 2
    return tm


# --------------------------------------------------------------------------------------
# Kernel 1: one (batch, head) attention tile.
# --------------------------------------------------------------------------------------
def _mha_head_kernel(x_ref, m_ref, wq_ref, bq_ref, wk_ref, bk_ref, wv_ref, bv_ref,
                     o_ref, *, scale):
    x = x_ref[0].astype(_BF16)                                             # [S, H]
    q = jnp.dot(x, wq_ref[0], preferred_element_type=_F32) + bq_ref[0]     # [S, hd]
    k = jnp.dot(x, wk_ref[0], preferred_element_type=_F32) + bk_ref[0]
    v = jnp.dot(x, wv_ref[0], preferred_element_type=_F32) + bv_ref[0]
    s = jax.lax.dot_general(q.astype(_BF16), k.astype(_BF16),
                            (((1,), (1,)), ((), ())),
                            preferred_element_type=_F32) * scale           # [S, S]
    s = s + m_ref[0]
    s = s - jnp.max(s, axis=-1, keepdims=True)
    p = jnp.exp(s)
    p = p / jnp.sum(p, axis=-1, keepdims=True)
    # TODO(synk): attention-probs dropout (eval identity) and head_mask (None) not applied.
    ctx = jnp.dot(p.astype(_BF16), v.astype(_BF16), preferred_element_type=_F32)
    o_ref[0, 0] = ctx.astype(o_ref.dtype)


def _attention(x, add_mask, wq_h, bq_h, wk_h, bk_h, wv_h, bv_h):
    B, S, H = x.shape
    nh, _, hd = wq_h.shape
    w_spec = pl.BlockSpec((1, H, hd), lambda b, h: (h, 0, 0))
    b_spec = pl.BlockSpec((1, 1, hd), lambda b, h: (h, 0, 0))
    flops = B * (6 * S * H * H + 4 * S * S * H)
    bytes_accessed = int(4 * x.size + 4 * add_mask.size + 2 * 3 * H * H + 4 * 3 * H
                         + 4 * B * S * H)
    return pl.pallas_call(
        functools.partial(_mha_head_kernel, scale=1.0 / math.sqrt(hd)),
        out_shape=jax.ShapeDtypeStruct((B, nh, S, hd), _F32),
        grid=(B, nh),
        in_specs=[pl.BlockSpec((1, S, H), lambda b, h: (b, 0, 0)),
                  pl.BlockSpec((1, S, S), lambda b, h: (b, 0, 0)),
                  w_spec, b_spec, w_spec, b_spec, w_spec, b_spec],
        out_specs=pl.BlockSpec((1, 1, S, hd), lambda b, h: (b, h, 0, 0)),
        compiler_params=pltpu.CompilerParams(
            dimension_semantics=("parallel", "parallel"),
            vmem_limit_bytes=_VMEM_LIMIT_BYTES),
        cost_estimate=pl.CostEstimate(flops=flops, transcendentals=B * nh * S * S,
                                      bytes_accessed=bytes_accessed),
    )(x, add_mask, wq_h, bq_h, wk_h, bk_h, wv_h, bv_h)


# --------------------------------------------------------------------------------------
# Kernel 2: self-output  = dense + bottleneck adapter + residual + LayerNorm.
# --------------------------------------------------------------------------------------
def _self_output_kernel(x_ref, res_ref, wd_ref, bd_ref, wdn_ref, bdn_ref,
                        wup_ref, bup_ref, g_ref, beta_ref, o_ref, *, eps):
    x = x_ref[...].astype(_BF16)
    h = jnp.dot(x, wd_ref[...], preferred_element_type=_F32) + bd_ref[...]
    # TODO(synk): nn.Dropout is identity here (eval mode); no in-kernel PRNG dropout.
    d = jax.nn.gelu(jnp.dot(h.astype(_BF16), wdn_ref[...],
                            preferred_element_type=_F32) + bdn_ref[...])
    u = jnp.dot(d.astype(_BF16), wup_ref[...], preferred_element_type=_F32) + bup_ref[...]
    y = h + u + res_ref[...].astype(_F32)
    mu = jnp.mean(y, axis=-1, keepdims=True)
    var = jnp.mean(jnp.square(y - mu), axis=-1, keepdims=True)
    o_ref[...] = ((y - mu) * jax.lax.rsqrt(var + eps) * g_ref[...]
                  + beta_ref[...]).astype(o_ref.dtype)


def _dense_adapter_ln(x, residual, w_dense, b_dense, w_down, b_down, w_up, b_up,
                      gamma, beta, *, eps, tm_req, out_dtype):
    N, D_in = x.shape
    H = w_dense.shape[1]
    Bp = w_down.shape[1]
    tm = _pick_tile(N, tm_req)
    b_dense = b_dense.reshape(1, H).astype(_F32)
    b_down = b_down.reshape(1, Bp).astype(_F32)
    b_up = b_up.reshape(1, H).astype(_F32)
    gamma = gamma.reshape(1, H).astype(_F32)
    beta = beta.reshape(1, H).astype(_F32)

    row_x = pl.BlockSpec((tm, D_in), lambda i: (i, 0))
    row_h = pl.BlockSpec((tm, H), lambda i: (i, 0))
    # Constant index_map -> the pipeline keeps these blocks resident (no re-DMA per step).
    full2 = lambda a: pl.BlockSpec(a.shape, lambda i: (0, 0))

    flops = 2 * N * (D_in * H + 2 * H * Bp)
    bytes_accessed = int(4 * (x.size + residual.size + N * H)
                         + 2 * (w_dense.size + w_down.size + w_up.size)
                         + 4 * (3 * H + Bp + 2 * H))
    return pl.pallas_call(
        functools.partial(_self_output_kernel, eps=eps),
        out_shape=jax.ShapeDtypeStruct((N, H), out_dtype),
        grid=(N // tm,),
        in_specs=[row_x, row_h,
                  full2(w_dense), full2(b_dense),
                  full2(w_down), full2(b_down),
                  full2(w_up), full2(b_up),
                  full2(gamma), full2(beta)],
        out_specs=row_h,
        compiler_params=pltpu.CompilerParams(
            dimension_semantics=("parallel",),
            vmem_limit_bytes=_VMEM_LIMIT_BYTES),
        cost_estimate=pl.CostEstimate(flops=flops, transcendentals=N * (Bp + 1),
                                      bytes_accessed=bytes_accessed),
    )(x, residual, w_dense, b_dense, w_down, b_down, w_up, b_up, gamma, beta)


# --------------------------------------------------------------------------------------
# Kernel 3: feed-forward = intermediate(gelu) + output dense + adapter + residual + LN.
# --------------------------------------------------------------------------------------
def _ffn_kernel(x_ref, wi_ref, bi_ref, wo_ref, bo_ref, wdn_ref, bdn_ref,
                wup_ref, bup_ref, g_ref, beta_ref, o_ref, *, eps):
    x = x_ref[...].astype(_BF16)
    a = jax.nn.gelu(jnp.dot(x, wi_ref[...], preferred_element_type=_F32) + bi_ref[...])
    h = jnp.dot(a.astype(_BF16), wo_ref[...], preferred_element_type=_F32) + bo_ref[...]
    # TODO(synk): nn.Dropout is identity here (eval mode); no in-kernel PRNG dropout.
    d = jax.nn.gelu(jnp.dot(h.astype(_BF16), wdn_ref[...],
                            preferred_element_type=_F32) + bdn_ref[...])
    u = jnp.dot(d.astype(_BF16), wup_ref[...], preferred_element_type=_F32) + bup_ref[...]
    y = h + u + x_ref[...].astype(_F32)
    mu = jnp.mean(y, axis=-1, keepdims=True)
    var = jnp.mean(jnp.square(y - mu), axis=-1, keepdims=True)
    o_ref[...] = ((y - mu) * jax.lax.rsqrt(var + eps) * g_ref[...]
                  + beta_ref[...]).astype(o_ref.dtype)


def _ffn(x, w_int, b_int, w_out, b_out, w_down, b_down, w_up, b_up,
         gamma, beta, *, eps, tm_req, out_dtype):
    N, H = x.shape
    I = w_int.shape[1]
    Bp = w_down.shape[1]
    tm = _pick_tile(N, tm_req)
    b_int = b_int.reshape(1, I).astype(_F32)
    b_out = b_out.reshape(1, H).astype(_F32)
    b_down = b_down.reshape(1, Bp).astype(_F32)
    b_up = b_up.reshape(1, H).astype(_F32)
    gamma = gamma.reshape(1, H).astype(_F32)
    beta = beta.reshape(1, H).astype(_F32)

    row_h = pl.BlockSpec((tm, H), lambda i: (i, 0))
    full2 = lambda a: pl.BlockSpec(a.shape, lambda i: (0, 0))

    flops = 2 * N * (2 * H * I + 2 * H * Bp)
    bytes_accessed = int(4 * (x.size + N * H)
                         + 2 * (2 * w_int.size + w_down.size + w_up.size)
                         + 4 * (I + 4 * H + Bp))
    return pl.pallas_call(
        functools.partial(_ffn_kernel, eps=eps),
        out_shape=jax.ShapeDtypeStruct((N, H), out_dtype),
        grid=(N // tm,),
        in_specs=[row_h,
                  full2(w_int), full2(b_int),
                  full2(w_out), full2(b_out),
                  full2(w_down), full2(b_down),
                  full2(w_up), full2(b_up),
                  full2(gamma), full2(beta)],
        out_specs=row_h,
        compiler_params=pltpu.CompilerParams(
            dimension_semantics=("parallel",),
            vmem_limit_bytes=_VMEM_LIMIT_BYTES),
        cost_estimate=pl.CostEstimate(flops=flops, transcendentals=N * (I + Bp + 1),
                                      bytes_accessed=bytes_accessed),
    )(x, w_int, b_int, w_out, b_out, w_down, b_down, w_up, b_up, gamma, beta)


# --------------------------------------------------------------------------------------
# Host-side mask folding / padding.
# --------------------------------------------------------------------------------------
def _fold_and_pad_adapter(w_down, b_down, w_up, b_up, down_mask, up_mask):
    """Fold binary neuron masks into the adapter up-projection and pad the bottleneck
    to a multiple of 128 lanes (padded columns produce exact zeros)."""
    if down_mask is not None:
        w_up = w_up * down_mask[:, None]
    if up_mask is not None:
        w_up = w_up * up_mask[None, :]
        b_up = b_up * up_mask
    badp = w_down.shape[1]
    bp = _round_up(badp, 128)
    if bp != badp:
        pad = bp - badp
        w_down = jnp.pad(w_down, ((0, 0), (0, pad)))
        b_down = jnp.pad(b_down, ((0, pad),))
        w_up = jnp.pad(w_up, ((0, pad), (0, 0)))
    return w_down.astype(_BF16), b_down.astype(_F32), w_up.astype(_BF16), b_up.astype(_F32)


# --------------------------------------------------------------------------------------
# Full layer forward (encoder path; absolute position embeddings; eval mode).
# --------------------------------------------------------------------------------------
def my_roberta_layer(hidden_states, params, *, num_heads, attention_mask=None,
                     q_mask=None, k_mask=None, intermediate_mask=None, output_mask=None,
                     down_mask=None, up_mask=None, eps=1e-5, tm=256):
    # TODO(synk): relative_key(_query) position embeddings, PrefixTuningShim, cross-attention
    # and decoder KV-cache paths are not implemented (encoder forward only).
    B, S, H = hidden_states.shape
    N = B * S
    assert H % num_heads == 0
    hd = H // num_heads

    x = hidden_states.astype(_F32)
    x2d = x.reshape(N, H)

    # ---- attention: q/k per-output-neuron masks folded into weights (as torch does) ----
    wq = params["w_q"] if q_mask is None else params["w_q"] * q_mask[None, :]
    wk = params["w_k"] if k_mask is None else params["w_k"] * k_mask[None, :]

    def per_head_w(w):
        return w.reshape(H, num_heads, hd).transpose(1, 0, 2).astype(_BF16)

    def per_head_b(b):
        return b.reshape(num_heads, 1, hd).astype(_F32)

    if attention_mask is None:
        add_mask = jnp.zeros((B, S, S), _F32)
    else:
        add_mask = jnp.broadcast_to(attention_mask.astype(_F32), (B, 1, S, S))[:, 0]

    ctx = _attention(x, add_mask,
                     per_head_w(wq), per_head_b(params["b_q"]),
                     per_head_w(wk), per_head_b(params["b_k"]),
                     per_head_w(params["w_v"]), per_head_b(params["b_v"]))
    ctx2d = ctx.transpose(0, 2, 1, 3).reshape(N, H)

    # ---- self-output: dense + masked bottleneck adapter + LayerNorm ----
    wdn1, bdn1, wup1, bup1 = _fold_and_pad_adapter(
        params["w_down1"], params["b_down1"], params["w_up1"], params["b_up1"],
        down_mask, up_mask)
    attn_out = _dense_adapter_ln(
        ctx2d, x2d,
        params["w_dense"].astype(_BF16), params["b_dense"],
        wdn1, bdn1, wup1, bup1,
        params["ln1_gamma"], params["ln1_beta"],
        eps=eps, tm_req=tm, out_dtype=_F32)

    # ---- feed-forward: intermediate/output neuron masks folded into weights+biases ----
    wi = params["w_int"] if intermediate_mask is None else params["w_int"] * intermediate_mask[None, :]
    bi = params["b_int"] if intermediate_mask is None else params["b_int"] * intermediate_mask
    wo = params["w_out"] if output_mask is None else params["w_out"] * output_mask[None, :]
    bo = params["b_out"] if output_mask is None else params["b_out"] * output_mask
    wdn2, bdn2, wup2, bup2 = _fold_and_pad_adapter(
        params["w_down2"], params["b_down2"], params["w_up2"], params["b_up2"],
        down_mask, up_mask)
    out2d = _ffn(attn_out,
                 wi.astype(_BF16), bi, wo.astype(_BF16), bo,
                 wdn2, bdn2, wup2, bup2,
                 params["ln2_gamma"], params["ln2_beta"],
                 eps=eps, tm_req=tm, out_dtype=hidden_states.dtype)
    return out2d.reshape(B, S, H)


# --------------------------------------------------------------------------------------
# Parameters + pure-JAX reference (same bf16-matmul / f32-accumulate precision).
# --------------------------------------------------------------------------------------
def init_params(key, hidden, intermediate, bottleneck, dtype=jnp.float32):
    keys = iter(jax.random.split(key, 32))

    def w(din, dout):
        return jax.random.normal(next(keys), (din, dout), dtype) / math.sqrt(din)

    def b(d):
        return jax.random.normal(next(keys), (d,), dtype) * 0.02

    H, I, Badp = hidden, intermediate, bottleneck
    return {
        # all weights stored as (in, out) = transpose of torch nn.Linear.weight
        "w_q": w(H, H), "b_q": b(H),
        "w_k": w(H, H), "b_k": b(H),
        "w_v": w(H, H), "b_v": b(H),
        "w_dense": w(H, H), "b_dense": b(H),
        "w_down1": w(H, Badp), "b_down1": b(Badp),
        "w_up1": w(Badp, H), "b_up1": b(H),
        "ln1_gamma": 1.0 + 0.1 * jax.random.normal(next(keys), (H,), dtype),
        "ln1_beta": 0.1 * jax.random.normal(next(keys), (H,), dtype),
        "w_int": w(H, I), "b_int": b(I),
        "w_out": w(I, H), "b_out": b(H),
        "w_down2": w(H, Badp), "b_down2": b(Badp),
        "w_up2": w(Badp, H), "b_up2": b(H),
        "ln2_gamma": 1.0 + 0.1 * jax.random.normal(next(keys), (H,), dtype),
        "ln2_beta": 0.1 * jax.random.normal(next(keys), (H,), dtype),
    }


def reference_forward(hidden_states, params, *, num_heads, attention_mask, q_mask, k_mask,
                      intermediate_mask, output_mask, down_mask, up_mask, eps=1e-5):
    """Plain-JAX reference with masks applied at their original (unfused) locations."""
    B, S, H = hidden_states.shape
    hd = H // num_heads
    mm = lambda a, w: jnp.dot(a.astype(_BF16), w.astype(_BF16), preferred_element_type=_F32)

    x = hidden_states.reshape(B * S, H).astype(_F32)
    wq = params["w_q"] if q_mask is None else params["w_q"] * q_mask[None, :]
    wk = params["w_k"] if k_mask is None else params["w_k"] * k_mask[None, :]
    q = mm(x, wq) + params["b_q"]
    k = mm(x, wk) + params["b_k"]
    v = mm(x, params["w_v"]) + params["b_v"]

    def heads(t):
        return t.reshape(B, S, num_heads, hd).transpose(0, 2, 1, 3)

    qh, kh, vh = heads(q), heads(k), heads(v)
    s = jnp.einsum("bhqd,bhkd->bhqk", qh.astype(_BF16), kh.astype(_BF16),
                   preferred_element_type=_F32) * (1.0 / math.sqrt(hd))
    if attention_mask is not None:
        s = s + attention_mask
    p = jax.nn.softmax(s, axis=-1)
    ctx = jnp.einsum("bhqk,bhkd->bhqd", p.astype(_BF16), vh.astype(_BF16),
                     preferred_element_type=_F32)
    ctx = ctx.transpose(0, 2, 1, 3).reshape(B * S, H)

    def adapter_ln(h, residual, wdn, bdn, wup, bup, g, bb):
        d = jax.nn.gelu(mm(h, wdn) + bdn)
        if down_mask is not None:
            d = d * down_mask[None, :]
        u = mm(d, wup) + bup
        if up_mask is not None:
            u = u * up_mask[None, :]
        y = h + u + residual
        mu = jnp.mean(y, axis=-1, keepdims=True)
        var = jnp.mean(jnp.square(y - mu), axis=-1, keepdims=True)
        return (y - mu) * jax.lax.rsqrt(var + eps) * g + bb

    h1 = mm(ctx, params["w_dense"]) + params["b_dense"]
    attn_out = adapter_ln(h1, x, params["w_down1"], params["b_down1"],
                          params["w_up1"], params["b_up1"],
                          params["ln1_gamma"], params["ln1_beta"])

    xi = mm(attn_out, params["w_int"]) + params["b_int"]
    if intermediate_mask is not None:
        xi = xi * intermediate_mask[None, :]
    a = jax.nn.gelu(xi)
    h2 = mm(a, params["w_out"]) + params["b_out"]
    if output_mask is not None:
        h2 = h2 * output_mask[None, :]
    out = adapter_ln(h2, attn_out, params["w_down2"], params["b_down2"],
                     params["w_up2"], params["b_up2"],
                     params["ln2_gamma"], params["ln2_beta"])
    return out.reshape(B, S, H)


if __name__ == "__main__":
    batch, seq, hidden, heads = 2, 16, 64, 2
    intermediate, bottleneck = 128, 32

    key = jax.random.PRNGKey(0)
    keys = jax.random.split(key, 8)
    hidden_states = jax.random.normal(keys[0], (batch, seq, hidden), jnp.float32)

    # HF-style additive extended attention mask (mask out the last 3 keys of batch 1)
    valid = jnp.ones((batch, seq), jnp.float32).at[1, -3:].set(0.0)
    attention_mask = (1.0 - valid)[:, None, None, :] * -1e9

    q_mask = (jax.random.uniform(keys[1], (hidden,)) > 0.2).astype(jnp.float32)
    k_mask = (jax.random.uniform(keys[2], (hidden,)) > 0.2).astype(jnp.float32)
    intermediate_mask = (jax.random.uniform(keys[3], (intermediate,)) > 0.3).astype(jnp.float32)
    output_mask = (jax.random.uniform(keys[4], (hidden,)) > 0.3).astype(jnp.float32)
    down_mask = (jax.random.uniform(keys[5], (bottleneck,)) > 0.3).astype(jnp.float32)
    up_mask = (jax.random.uniform(keys[6], (hidden,)) > 0.3).astype(jnp.float32)

    params = init_params(keys[7], hidden, intermediate, bottleneck)

    out = my_roberta_layer(hidden_states, params, num_heads=heads,
                           attention_mask=attention_mask, q_mask=q_mask, k_mask=k_mask,
                           intermediate_mask=intermediate_mask, output_mask=output_mask,
                           down_mask=down_mask, up_mask=up_mask)
    out = jax.block_until_ready(out)

    ref = reference_forward(hidden_states, params, num_heads=heads,
                            attention_mask=attention_mask, q_mask=q_mask, k_mask=k_mask,
                            intermediate_mask=intermediate_mask, output_mask=output_mask,
                            down_mask=down_mask, up_mask=up_mask)
    ref = jax.block_until_ready(ref)

    assert out.shape == hidden_states.shape
    max_err = float(jnp.max(jnp.abs(out - ref)))
    assert jnp.allclose(out, ref, atol=1e-2, rtol=1e-2), f"mismatch vs reference (max abs err {max_err})"

    print("KERNEL_OK")
</pallas_src>

<mosaic_0001>
module attributes {stable_mosaic.version = 11 : i64} {
  func.func @_mha_head_kernel(%arg0: i32, %arg1: i32, %arg2: memref<1x16x64xf32, #tpu.memory_space<vmem>>, %arg3: memref<1x16x16xf32, #tpu.memory_space<vmem>>, %arg4: memref<1x64x32xbf16, #tpu.memory_space<vmem>>, %arg5: memref<1x1x32xf32, #tpu.memory_space<vmem>>, %arg6: memref<1x64x32xbf16, #tpu.memory_space<vmem>>, %arg7: memref<1x1x32xf32, #tpu.memory_space<vmem>>, %arg8: memref<1x64x32xbf16, #tpu.memory_space<vmem>>, %arg9: memref<1x1x32xf32, #tpu.memory_space<vmem>>, %arg10: memref<1x1x16x32xf32, #tpu.memory_space<vmem>>) attributes {dimension_semantics = [#tpu.dimension_semantics<parallel>, #tpu.dimension_semantics<parallel>], iteration_bounds = array<i64: 2, 2>, scalar_prefetch = 0 : i64, scratch_operands = 0 : i64, tpu.core_type = #tpu.core_type<tc>, window_params = [{transform_indices = @transform_0, window_bounds = array<i64: 1, 16, 64>}, {transform_indices = @transform_1, window_bounds = array<i64: 1, 16, 16>}, {transform_indices = @transform_2, window_bounds = array<i64: 1, 64, 32>}, {transform_indices = @transform_3, window_bounds = array<i64: 1, 1, 32>}, {transform_indices = @transform_4, window_bounds = array<i64: 1, 64, 32>}, {transform_indices = @transform_5, window_bounds = array<i64: 1, 1, 32>}, {transform_indices = @transform_6, window_bounds = array<i64: 1, 64, 32>}, {transform_indices = @transform_7, window_bounds = array<i64: 1, 1, 32>}, {transform_indices = @transform_8, window_bounds = array<i64: 1, 1, 16, 32>}]} {
    %c0 = arith.constant 0 : index
    %c0_0 = arith.constant 0 : index
    %c0_1 = arith.constant 0 : index
    %0 = vector.load %arg2[%c0, %c0_0, %c0_1] : memref<1x16x64xf32, #tpu.memory_space<vmem>>, vector<1x16x64xf32>
    %1 = vector.shape_cast %0 : vector<1x16x64xf32> to vector<16x64xf32>
    %2 = arith.truncf %1 : vector<16x64xf32> to vector<16x64xbf16>
    %c0_2 = arith.constant 0 : index
    %c0_3 = arith.constant 0 : index
    %c0_4 = arith.constant 0 : index
    %3 = vector.load %arg4[%c0_2, %c0_3, %c0_4] : memref<1x64x32xbf16, #tpu.memory_space<vmem>>, vector<1x64x32xbf16>
    %4 = vector.shape_cast %3 : vector<1x64x32xbf16> to vector<64x32xbf16>
    %cst = arith.constant dense<0.000000e+00> : vector<16x32xf32>
    %5 = tpu.matmul %2, %4, %cst {dimension_numbers = #tpu.dot_dimension_numbers<[1], [0], [0], [1], [0, 0, 1, 1], [], []>} : vector<16x64xbf16>, vector<64x32xbf16>, vector<16x32xf32> -> vector<16x32xf32>
    %c0_5 = arith.constant 0 : index
    %c0_6 = arith.constant 0 : index
    %c0_7 = arith.constant 0 : index
    %6 = vector.load %arg5[%c0_5, %c0_6, %c0_7] : memref<1x1x32xf32, #tpu.memory_space<vmem>>, vector<1x1x32xf32>
    %7 = vector.shape_cast %6 : vector<1x1x32xf32> to vector<1x32xf32>
    %8 = vector.broadcast %7 : vector<1x32xf32> to vector<16x32xf32>
    %9 = arith.addf %5, %8 : vector<16x32xf32>
    %c0_8 = arith.constant 0 : index
    %c0_9 = arith.constant 0 : index
    %c0_10 = arith.constant 0 : index
    %10 = vector.load %arg6[%c0_8, %c0_9, %c0_10] : memref<1x64x32xbf16, #tpu.memory_space<vmem>>, vector<1x64x32xbf16>
    %11 = vector.shape_cast %10 : vector<1x64x32xbf16> to vector<64x32xbf16>
    %cst_11 = arith.constant dense<0.000000e+00> : vector<16x32xf32>
    %12 = tpu.matmul %2, %11, %cst_11 {dimension_numbers = #tpu.dot_dimension_numbers<[1], [0], [0], [1], [0, 0, 1, 1], [], []>} : vector<16x64xbf16>, vector<64x32xbf16>, vector<16x32xf32> -> vector<16x32xf32>
    %c0_12 = arith.constant 0 : index
    %c0_13 = arith.constant 0 : index
    %c0_14 = arith.constant 0 : index
    %13 = vector.load %arg7[%c0_12, %c0_13, %c0_14] : memref<1x1x32xf32, #tpu.memory_space<vmem>>, vector<1x1x32xf32>
    %14 = vector.shape_cast %13 : vector<1x1x32xf32> to vector<1x32xf32>
    %15 = vector.broadcast %14 : vector<1x32xf32> to vector<16x32xf32>
    %16 = arith.addf %12, %15 : vector<16x32xf32>
    %c0_15 = arith.constant 0 : index
    %c0_16 = arith.constant 0 : index
    %c0_17 = arith.constant 0 : index
    %17 = vector.load %arg8[%c0_15, %c0_16, %c0_17] : memref<1x64x32xbf16, #tpu.memory_space<vmem>>, vector<1x64x32xbf16>
    %18 = vector.shape_cast %17 : vector<1x64x32xbf16> to vector<64x32xbf16>
    %cst_18 = arith.constant dense<0.000000e+00> : vector<16x32xf32>
    %19 = tpu.matmul %2, %18, %cst_18 {dimension_numbers = #tpu.dot_dimension_numbers<[1], [0], [0], [1], [0, 0, 1, 1], [], []>} : vector<16x64xbf16>, vector<64x32xbf16>, vector<16x32xf32> -> vector<16x32xf32>
    %c0_19 = arith.constant 0 : index
    %c0_20 = arith.constant 0 : index
    %c0_21 = arith.constant 0 : index
    %20 = vector.load %arg9[%c0_19, %c0_20, %c0_21] : memref<1x1x32xf32, #tpu.memory_space<vmem>>, vector<1x1x32xf32>
    %21 = vector.shape_cast %20 : vector<1x1x32xf32> to vector<1x32xf32>
    %22 = vector.broadcast %21 : vector<1x32xf32> to vector<16x32xf32>
    %23 = arith.addf %19, %22 : vector<16x32xf32>
    %24 = arith.truncf %9 : vector<16x32xf32> to vector<16x32xbf16>
    %25 = arith.truncf %16 : vector<16x32xf32> to vector<16x32xbf16>
    %cst_22 = arith.constant dense<0.000000e+00> : vector<16x16xf32>
    %26 = tpu.matmul %24, %25, %cst_22 {dimension_numbers = #tpu.dot_dimension_numbers<[1], [1], [0], [0], [0, 0, 1, 0], [], []>} : vector<16x32xbf16>, vector<16x32xbf16>, vector<16x16xf32> -> vector<16x16xf32>
    %cst_23 = arith.constant 0.176776692 : f32
    %27 = vector.broadcast %cst_23 : f32 to vector<16x16xf32>
    %28 = arith.mulf %26, %27 : vector<16x16xf32>
    %c0_24 = arith.constant 0 : index
    %c0_25 = arith.constant 0 : index
    %c0_26 = arith.constant 0 : index
    %29 = vector.load %arg3[%c0_24, %c0_25, %c0_26] : memref<1x16x16xf32, #tpu.memory_space<vmem>>, vector<1x16x16xf32>
    %30 = vector.shape_cast %29 : vector<1x16x16xf32> to vector<16x16xf32>
    %31 = arith.addf %28, %30 : vector<16x16xf32>
    %cst_27 = arith.constant dense<0xFF800000> : vector<16xf32>
    %32 = vector.multi_reduction <maximumf>, %31, %cst_27 [1] : vector<16x16xf32> to vector<16xf32>
    %33 = vector.shape_cast %32 : vector<16xf32> to vector<16x1xf32>
    %34 = vector.broadcast %33 : vector<16x1xf32> to vector<16x16xf32>
    %35 = arith.subf %31, %34 : vector<16x16xf32>
    %36 = math.exp %35 : vector<16x16xf32>
    %cst_28 = arith.constant dense<0.000000e+00> : vector<16xf32>
    %37 = vector.multi_reduction <add>, %36, %cst_28 [1] : vector<16x16xf32> to vector<16xf32>
    %38 = vector.shape_cast %37 : vector<16xf32> to vector<16x1xf32>
    %39 = vector.broadcast %38 : vector<16x1xf32> to vector<16x16xf32>
    %40 = arith.divf %36, %39 : vector<16x16xf32>
    %41 = arith.truncf %40 : vector<16x16xf32> to vector<16x16xbf16>
    %42 = arith.truncf %23 : vector<16x32xf32> to vector<16x32xbf16>
    %cst_29 = arith.constant dense<0.000000e+00> : vector<16x32xf32>
    %43 = tpu.matmul %41, %42, %cst_29 {dimension_numbers = #tpu.dot_dimension_numbers<[1], [0], [0], [1], [0, 0, 1, 1], [], []>} : vector<16x16xbf16>, vector<16x32xbf16>, vector<16x32xf32> -> vector<16x32xf32>
    %c0_30 = arith.constant 0 : index
    %c0_31 = arith.constant 0 : index
    %c0_32 = arith.constant 0 : index
    %c0_33 = arith.constant 0 : index
    %44 = vector.load %arg10[%c0_30, %c0_31, %c0_32, %c0_33] : memref<1x1x16x32xf32, #tpu.memory_space<vmem>>, vector<1x1x16x32xf32>
    %45 = vector.shape_cast %44 : vector<1x1x16x32xf32> to vector<16x32xf32>
    %46 = vector.shape_cast %43 : vector<16x32xf32> to vector<1x1x16x32xf32>
    tpu.vector_store %arg10[%c0_30, %c0_31, %c0_32, %c0_33], %46 {strides = array<i32>} : memref<1x1x16x32xf32, #tpu.memory_space<vmem>>, vector<1x1x16x32xf32>,
    return
  }
  func.func @transform_0(%arg0: i32, %arg1: i32) -> (i32, i32, i32) {
    %c0_i32 = arith.constant 0 : i32
    %c0_i32_0 = arith.constant 0 : i32
    %c0_i32_1 = arith.constant 0 : i32
    return %arg0, %c0_i32, %c0_i32_0 : i32, i32, i32
  }
  func.func @transform_1(%arg0: i32, %arg1: i32) -> (i32, i32, i32) {
    %c0_i32 = arith.constant 0 : i32
    %c0_i32_0 = arith.constant 0 : i32
    %c0_i32_1 = arith.constant 0 : i32
    return %arg0, %c0_i32, %c0_i32_0 : i32, i32, i32
  }
  func.func @transform_2(%arg0: i32, %arg1: i32) -> (i32, i32, i32) {
    %c0_i32 = arith.constant 0 : i32
    %c0_i32_0 = arith.constant 0 : i32
    %c0_i32_1 = arith.constant 0 : i32
    return %arg1, %c0_i32, %c0_i32_0 : i32, i32, i32
  }
  func.func @transform_3(%arg0: i32, %arg1: i32) -> (i32, i32, i32) {
    %c0_i32 = arith.constant 0 : i32
    %c0_i32_0 = arith.constant 0 : i32
    %c0_i32_1 = arith.constant 0 : i32
    return %arg1, %c0_i32, %c0_i32_0 : i32, i32, i32
  }
  func.func @transform_4(%arg0: i32, %arg1: i32) -> (i32, i32, i32) {
    %c0_i32 = arith.constant 0 : i32
    %c0_i32_0 = arith.constant 0 : i32
    %c0_i32_1 = arith.constant 0 : i32
    return %arg1, %c0_i32, %c0_i32_0 : i32, i32, i32
  }
  func.func @transform_5(%arg0: i32, %arg1: i32) -> (i32, i32, i32) {
    %c0_i32 = arith.constant 0 : i32
    %c0_i32_0 = arith.constant 0 : i32
    %c0_i32_1 = arith.constant 0 : i32
    return %arg1, %c0_i32, %c0_i32_0 : i32, i32, i32
  }
  func.func @transform_6(%arg0: i32, %arg1: i32) -> (i32, i32, i32) {
    %c0_i32 = arith.constant 0 : i32
    %c0_i32_0 = arith.constant 0 : i32
    %c0_i32_1 = arith.constant 0 : i32
    return %arg1, %c0_i32, %c0_i32_0 : i32, i32, i32
  }
  func.func @transform_7(%arg0: i32, %arg1: i32) -> (i32, i32, i32) {
    %c0_i32 = arith.constant 0 : i32
    %c0_i32_0 = arith.constant 0 : i32
    %c0_i32_1 = arith.constant 0 : i32
    return %arg1, %c0_i32, %c0_i32_0 : i32, i32, i32
  }
  func.func @transform_8(%arg0: i32, %arg1: i32) -> (i32, i32, i32, i32) {
    %c0_i32 = arith.constant 0 : i32
    %c0_i32_0 = arith.constant 0 : i32
    %c0_i32_1 = arith.constant 0 : i32
    return %arg0, %arg1, %c0_i32, %c0_i32_0 : i32, i32, i32, i32
  }
}

</mosaic_0001>

<llo_original>
// kernel: tpu_custom_call.1
$region0: #{tpu_custom_call.1}
  #allocation0 [shape = 'u32[]', space=smem, size = 0x4, offset = 0x4, fixed_abs, tag = 'smem constant byte address 0x4 - core index']
  #allocation1 [shape = 'u32[72,128]{1,0:T(1,128)}', space=vmem, size = 0x9000, scoped, tag = 'internal scratch']
  %s0 = inlined_call_operand.vmem [shape: f32[2,16,64], index: 0, kind: input, shape index: {}]
  %s1 = inlined_call_operand.vmem [shape: f32[2,16,16], index: 1, kind: input, shape index: {}]
  %s2 = inlined_call_operand.vmem [shape: bf16[2,64,32], index: 2, kind: input, shape index: {}]
  %s3 = inlined_call_operand.vmem [shape: f32[2,1,32], index: 3, kind: input, shape index: {}]
  %s4 = inlined_call_operand.vmem [shape: bf16[2,64,32], index: 4, kind: input, shape index: {}]
  %s5 = inlined_call_operand.vmem [shape: f32[2,1,32], index: 5, kind: input, shape index: {}]
  %s6 = inlined_call_operand.vmem [shape: bf16[2,64,32], index: 6, kind: input, shape index: {}]
  %s7 = inlined_call_operand.vmem [shape: f32[2,1,32], index: 7, kind: input, shape index: {}]
  %s8 = inlined_call_operand.hbm [shape: f32[2,2,16,32], index: 8, kind: output, shape index: {}]
  %s9 = sld [smem:[#allocation0]]
  $region65: #{tpu_custom_call.1} parent=0
    _
  %s11 = ssub.s32 1, %s9
  %s12 = scalar_select 0, %s11, %s9
  $region1: #{tpu_custom_call.1} parent=0
    #allocation2 [shape = 'u8[16384]{0}', space=vmem, size = 0x4000, scoped, tag = 'output window, operand 0']
    #allocation3 [shape = 's32[2]{0}', space=sflag, size = 0x8, scoped, tag = 'scoped memory for tpu_custom_call.1']
    %13 = vsyncpa [#allocation3], 0
    %s14 = scalar_lea.sflag [#allocation3], 1
    %15 = vsyncpa %s14, 0
    loop: start=0, step=1, limit=6
    $region2: #{tpu_custom_call.1} parent=1 // loop_pre_header
      _
    $region3: #{tpu_custom_call.1} parent=1 // loop_header
      %s17 = sphi 0, %s21
      %p18 = scmp.ge.s32.totalorder %s17, 6
      %s24 = sphi 0, %s36
      %s25 = sphi 0, %s32
      %s26 = sphi 0, %s24
      %s27 = sphi 0, %s25
      %s28 = sphi 0, %s26
      %s29 = sphi 0, %s27
      %s39 = sphi 0, %s41
      %s42 = sphi 0, %s39
      %s43 = sphi 0, %s42
      %s59 = sphi 0, %s43
      %s65 = sphi 0, %s67
      %s68 = sphi 0, %s65
      %s69 = sphi 0, %s68
      %s85 = sphi 0, %s69
      %s91 = sphi 0, %s93
      %s94 = sphi 0, %s91
      %s95 = sphi 0, %s94
      %s111 = sphi 0, %s95
      %s117 = sphi 0, %s119
      %s120 = sphi 0, %s117
      %s121 = sphi 0, %s120
      %s137 = sphi 0, %s121
      %s143 = sphi 0, %s145
      %s146 = sphi 0, %s143
      %s147 = sphi 0, %s146
      %s163 = sphi 0, %s147
      %s169 = sphi 0, %s171
      %s172 = sphi 0, %s169
      %s173 = sphi 0, %s172
      %s189 = sphi 0, %s173
      %s195 = sphi 0, %s197
      %s198 = sphi 0, %s195
      %s199 = sphi 0, %s198
      %s215 = sphi 0, %s199
      %s221 = sphi 0, %s223
      %s224 = sphi 0, %s221
      %s225 = sphi 0, %s224
      %s241 = sphi 0, %s225
      %s249 = sphi 0, %s251
      %s252 = sphi 0, %s249
      %s253 = sphi 0, %s252
      %s269 = sphi 0, %s253
    $region4: #{tpu_custom_call.1} parent=1 // loop_header_branch
      %20 = sbr.rel (%p18) target = $region8
    $region5: #{tpu_custom_call.1} parent=1 // loop_body
      %s22 = ssub.s32 %s17, 1
      %s23 = ssub.s32 %s17, 2
      %s30 = sadd.s32 1, %s25
      %p31 = scmp.ge.s32.totalorder %s30, 2
      %s32 = scalar_select %p31, 0, %s30
      %s33 = sadd.s32 1, %s24
      %s34 = scalar_select %p31, %s33, %s24
      %p35 = scmp.ge.s32.totalorder %s34, 2
      %s36 = scalar_select %p35, 0, %s34
      %s37 = ssub.s32 %s24, %s36
      %p38 = scmp.eq.s32.totalorder %s37, 0
      %s40 = sadd.s32 %s39, 1
      %s41 = scalar_select %p38, %s39, %s40
      %p44 = pneg %p38
      %p45 = scmp.eq.s32.totalorder %s17, 3
      %p46 = por %p44, %p45
      %p47 = scmp.ne.s32.totalorder %s39, %s42
      %p48 = scmp.eq.s32.totalorder %s17, 0
      %p49 = por %p47, %p48
      %p50 = scmp.ne.s32.totalorder %s39, %s42
      %p51 = scmp.eq.s32.totalorder %s22, 3
      %p52 = por %p50, %p51
      %p53 = scmp.ne.s32.totalorder %s42, %s43
      %p54 = scmp.eq.s32.totalorder %s22, 0
      %p55 = por %p53, %p54
      %p56 = scmp.ne.s32.totalorder %s42, %s43
      %p57 = scmp.eq.s32.totalorder %s23, 3
      %p58 = por %p56, %p57
      %p60 = scmp.ne.s32.totalorder %s43, %s59
      %p61 = scmp.eq.s32.totalorder %s23, 0
      %p62 = por %p60, %p61
      %s63 = ssub.s32 %s24, %s36
      %p64 = scmp.eq.s32.totalorder %s63, 0
      %s66 = sadd.s32 %s65, 1
      %s67 = scalar_select %p64, %s65, %s66
      %p70 = pneg %p64
      %p71 = scmp.eq.s32.totalorder %s17, 3
      %p72 = por %p70, %p71
      %p73 = scmp.ne.s32.totalorder %s65, %s68
      %p74 = scmp.eq.s32.totalorder %s17, 0
      %p75 = por %p73, %p74
      %p76 = scmp.ne.s32.totalorder %s65, %s68
      %p77 = scmp.eq.s32.totalorder %s22, 3
      %p78 = por %p76, %p77
      %p79 = scmp.ne.s32.totalorder %s68, %s69
      %p80 = scmp.eq.s32.totalorder %s22, 0
      %p81 = por %p79, %p80
      %p82 = scmp.ne.s32.totalorder %s68, %s69
      %p83 = scmp.eq.s32.totalorder %s23, 3
      %p84 = por %p82, %p83
      %p86 = scmp.ne.s32.totalorder %s69, %s85
      %p87 = scmp.eq.s32.totalorder %s23, 0
      %p88 = por %p86, %p87
      %s89 = ssub.s32 %s25, %s32
      %p90 = scmp.eq.s32.totalorder %s89, 0
      %s92 = sadd.s32 %s91, 1
      %s93 = scalar_select %p90, %s91, %s92
      %p96 = pneg %p90
      %p97 = scmp.eq.s32.totalorder %s17, 3
      %p98 = por %p96, %p97
      %p99 = scmp.ne.s32.totalorder %s91, %s94
      %p100 = scmp.eq.s32.totalorder %s17, 0
      %p101 = por %p99, %p100
      %p102 = scmp.ne.s32.totalorder %s91, %s94
      %p103 = scmp.eq.s32.totalorder %s22, 3
      %p104 = por %p102, %p103
      %p105 = scmp.ne.s32.totalorder %s94, %s95
      %p106 = scmp.eq.s32.totalorder %s22, 0
      %p107 = por %p105, %p106
      %p108 = scmp.ne.s32.totalorder %s94, %s95
      %p109 = scmp.eq.s32.totalorder %s23, 3
      %p110 = por %p108, %p109
      %p112 = scmp.ne.s32.totalorder %s95, %s111
      %p113 = scmp.eq.s32.totalorder %s23, 0
      %p114 = por %p112, %p113
      %s115 = ssub.s32 %s25, %s32
      %p116 = scmp.eq.s32.totalorder %s115, 0
      %s118 = sadd.s32 %s117, 1
      %s119 = scalar_select %p116, %s117, %s118
      %p122 = pneg %p116
      %p123 = scmp.eq.s32.totalorder %s17, 3
      %p124 = por %p122, %p123
      %p125 = scmp.ne.s32.totalorder %s117, %s120
      %p126 = scmp.eq.s32.totalorder %s17, 0
      %p127 = por %p125, %p126
      %p128 = scmp.ne.s32.totalorder %s117, %s120
      %p129 = scmp.eq.s32.totalorder %s22, 3
      %p130 = por %p128, %p129
      %p131 = scmp.ne.s32.totalorder %s120, %s121
      %p132 = scmp.eq.s32.totalorder %s22, 0
      %p133 = por %p131, %p132
      %p134 = scmp.ne.s32.totalorder %s120, %s121
      %p135 = scmp.eq.s32.totalorder %s23, 3
      %p136 = por %p134, %p135
      %p138 = scmp.ne.s32.totalorder %s121, %s137
      %p139 = scmp.eq.s32.totalorder %s23, 0
      %p140 = por %p138, %p139
      %s141 = ssub.s32 %s25, %s32
      %p142 = scmp.eq.s32.totalorder %s141, 0
      %s144 = sadd.s32 %s143, 1
      %s145 = scalar_select %p142, %s143, %s144
      %p148 = pneg %p142
      %p149 = scmp.eq.s32.totalorder %s17, 3
      %p150 = por %p148, %p149
      %p151 = scmp.ne.s32.totalorder %s143, %s146
      %p152 = scmp.eq.s32.totalorder %s17, 0
      %p153 = por %p151, %p152
      %p154 = scmp.ne.s32.totalorder %s143, %s146
      %p155 = scmp.eq.s32.totalorder %s22, 3
      %p156 = por %p154, %p155
      %p157 = scmp.ne.s32.totalorder %s146, %s147
      %p158 = scmp.eq.s32.totalorder %s22, 0
      %p159 = por %p157, %p158
      %p160 = scmp.ne.s32.totalorder %s146, %s147
      %p161 = scmp.eq.s32.totalorder %s23, 3
      %p162 = por %p160, %p161
      %p164 = scmp.ne.s32.totalorder %s147, %s163
      %p165 = scmp.eq.s32.totalorder %s23, 0
      %p166 = por %p164, %p165
      %s167 = ssub.s32 %s25, %s32
      %p168 = scmp.eq.s32.totalorder %s167, 0
      %s170 = sadd.s32 %s169, 1
      %s171 = scalar_select %p168, %s169, %s170
      %p174 = pneg %p168
      %p175 = scmp.eq.s32.totalorder %s17, 3
      %p176 = por %p174, %p175
      %p177 = scmp.ne.s32.totalorder %s169, %s172
      %p178 = scmp.eq.s32.totalorder %s17, 0
      %p179 = por %p177, %p178
      %p180 = scmp.ne.s32.totalorder %s169, %s172
      %p181 = scmp.eq.s32.totalorder %s22, 3
      %p182 = por %p180, %p181
      %p183 = scmp.ne.s32.totalorder %s172, %s173
      %p184 = scmp.eq.s32.totalorder %s22, 0
      %p185 = por %p183, %p184
      %p186 = scmp.ne.s32.totalorder %s172, %s173
      %p187 = scmp.eq.s32.totalorder %s23, 3
      %p188 = por %p186, %p187
      %p190 = scmp.ne.s32.totalorder %s173, %s189
      %p191 = scmp.eq.s32.totalorder %s23, 0
      %p192 = por %p190, %p191
      %s193 = ssub.s32 %s25, %s32
      %p194 = scmp.eq.s32.totalorder %s193, 0
      %s196 = sadd.s32 %s195, 1
      %s197 = scalar_select %p194, %s195, %s196
      %p200 = pneg %p194
      %p201 = scmp.eq.s32.totalorder %s17, 3
      %p202 = por %p200, %p201
      %p203 = scmp.ne.s32.totalorder %s195, %s198
      %p204 = scmp.eq.s32.totalorder %s17, 0
      %p205 = por %p203, %p204
      %p206 = scmp.ne.s32.totalorder %s195, %s198
      %p207 = scmp.eq.s32.totalorder %s22, 3
      %p208 = por %p206, %p207
      %p209 = scmp.ne.s32.totalorder %s198, %s199
      %p210 = scmp.eq.s32.totalorder %s22, 0
      %p211 = por %p209, %p210
      %p212 = scmp.ne.s32.totalorder %s198, %s199
      %p213 = scmp.eq.s32.totalorder %s23, 3
      %p214 = por %p212, %p213
      %p216 = scmp.ne.s32.totalorder %s199, %s215
      %p217 = scmp.eq.s32.totalorder %s23, 0
      %p218 = por %p216, %p217
      %s219 = ssub.s32 %s25, %s32
      %p220 = scmp.eq.s32.totalorder %s219, 0
      %s222 = sadd.s32 %s221, 1
      %s223 = scalar_select %p220, %s221, %s222
      %p226 = pneg %p220
      %p227 = scmp.eq.s32.totalorder %s17, 3
      %p228 = por %p226, %p227
      %p229 = scmp.ne.s32.totalorder %s221, %s224
      %p230 = scmp.eq.s32.totalorder %s17, 0
      %p231 = por %p229, %p230
      %p232 = scmp.ne.s32.totalorder %s221, %s224
      %p233 = scmp.eq.s32.totalorder %s22, 3
      %p234 = por %p232, %p233
      %p235 = scmp.ne.s32.totalorder %s224, %s225
      %p236 = scmp.eq.s32.totalorder %s22, 0
      %p237 = por %p235, %p236
      %p238 = scmp.ne.s32.totalorder %s224, %s225
      %p239 = scmp.eq.s32.totalorder %s23, 3
      %p240 = por %p238, %p239
      %p242 = scmp.ne.s32.totalorder %s225, %s241
      %p243 = scmp.eq.s32.totalorder %s23, 0
      %p244 = por %p242, %p243
      %s245 = ssub.s32 %s24, %s36
      %s246 = ssub.s32 %s25, %s32
      %s247 = sor.u32 %s245, %s246
      %p248 = scmp.eq.s32.totalorder %s247, 0
      %s250 = sadd.s32 %s249, 1
      %s251 = scalar_select %p248, %s249, %s250
      %p254 = pneg %p248
      %p255 = scmp.eq.s32.totalorder %s17, 3
      %p256 = por %p254, %p255
      %p257 = scmp.ne.s32.totalorder %s249, %s252
      %p258 = scmp.eq.s32.totalorder %s17, 0
      %p259 = por %p257, %p258
      %p260 = scmp.ne.s32.totalorder %s249, %s252
      %p261 = scmp.eq.s32.totalorder %s22, 3
      %p262 = por %p260, %p261
      %p263 = scmp.ne.s32.totalorder %s252, %s253
      %p264 = scmp.eq.s32.totalorder %s22, 0
      %p265 = por %p263, %p264
      %p266 = scmp.ne.s32.totalorder %s252, %s253
      %p267 = scmp.eq.s32.totalorder %s23, 3
      %p268 = por %p266, %p267
      %p270 = scmp.ne.s32.totalorder %s253, %s269
      %p271 = scmp.eq.s32.totalorder %s23, 0
      %p272 = por %p270, %p271
      %p273 = scmp.le.s32.totalorder 1, %s17
      %p274 = scmp.lt.s32.totalorder %s17, 5
      %p275 = pnand %p273, %p274
      %p276 = pneg %p275
      // Predicated region
      $region9: #{tpu_custom_call.1} parent=5 // pred_check
        _
      $region10: #{tpu_custom_call.1} parent=5 // pred_check_branch
        %278 = sbr.rel (%p275) target = $region12
      $region11: #{tpu_custom_call.1} parent=5 // pred_region
        %s279 = ssub.s32 %s17, 1
      $region12: #{tpu_custom_call.1} parent=5 // pred_fallthru
        _
      %p280 = scmp.lt.s32.totalorder %s17, 4
      // Predicated region
      $region13: #{tpu_custom_call.1} parent=5 // pred_check
        %p281 = pneg %p280
      $region14: #{tpu_custom_call.1} parent=5 // pred_check_branch
        %283 = sbr.rel (%p281) target = $region16
      $region15: #{tpu_custom_call.1} parent=5 // pred_region
        // Predicated region
        $region17: #{tpu_custom_call.1} parent=15 // pred_check
          %p284 = pneg %p49
        $region18: #{tpu_custom_call.1} parent=15 // pred_check_branch
          %286 = sbr.rel (%p284) target = $region20
        $region19: #{tpu_custom_call.1} parent=15 // pred_region
          %p287 = scmp.lt.s32.totalorder %s24, 1
          %s288 = scalar_select %p287, %s24, 1
          %s289 = smul.addr %s288, 2
          %s290 = smul.addr %s289, 8
          %s291 = scalar_lea.vmem %s0, %s290
        $region20: #{tpu_custom_call.1} parent=15 // pred_fallthru
          _
        // Predicated region
        $region21: #{tpu_custom_call.1} parent=15 // pred_check
          %p292 = pneg %p75
        $region22: #{tpu_custom_call.1} parent=15 // pred_check_branch
          %294 = sbr.rel (%p292) target = $region24
        $region23: #{tpu_custom_call.1} parent=15 // pred_region
          %p295 = scmp.lt.s32.totalorder %s24, 1
          %s296 = scalar_select %p295, %s24, 1
          %s297 = smul.addr %s296, 2
          %s298 = smul.addr %s297, 8
          %s299 = scalar_lea.vmem %s1, %s298
        $region24: #{tpu_custom_call.1} parent=15 // pred_fallthru
          _
        // Predicated region
        $region25: #{tpu_custom_call.1} parent=15 // pred_check
          %p300 = pneg %p101
        $region26: #{tpu_custom_call.1} parent=15 // pred_check_branch
          %302 = sbr.rel (%p300) target = $region28
        $region27: #{tpu_custom_call.1} parent=15 // pred_region
          %p303 = scmp.lt.s32.totalorder %s25, 1
          %s304 = scalar_select %p303, %s25, 1
          %s305 = smul.addr %s304, 8
          %s306 = smul.addr %s305, 4
          %s307 = scalar_lea.vmem %s2, %s306
        $region28: #{tpu_custom_call.1} parent=15 // pred_fallthru
          _
        // Predicated region
        $region29: #{tpu_custom_call.1} parent=15 // pred_check
          %p308 = pneg %p127
        $region30: #{tpu_custom_call.1} parent=15 // pred_check_branch
          %310 = sbr.rel (%p308) target = $region32
        $region31: #{tpu_custom_call.1} parent=15 // pred_region
          %p311 = scmp.lt.s32.totalorder %s25, 1
          %s312 = scalar_select %p311, %s25, 1
          %s313 = scalar_lea.vmem %s3, %s312
        $region32: #{tpu_custom_call.1} parent=15 // pred_fallthru
          _
        // Predicated region
        $region33: #{tpu_custom_call.1} parent=15 // pred_check
          %p314 = pneg %p153
        $region34: #{tpu_custom_call.1} parent=15 // pred_check_branch
          %316 = sbr.rel (%p314) target = $region36
        $region35: #{tpu_custom_call.1} parent=15 // pred_region
          %p317 = scmp.lt.s32.totalorder %s25, 1
          %s318 = scalar_select %p317, %s25, 1
          %s319 = smul.addr %s318, 8
          %s320 = smul.addr %s319, 4
          %s321 = scalar_lea.vmem %s4, %s320
        $region36: #{tpu_custom_call.1} parent=15 // pred_fallthru
          _
        // Predicated region
        $region37: #{tpu_custom_call.1} parent=15 // pred_check
          %p322 = pneg %p179
        $region38: #{tpu_custom_call.1} parent=15 // pred_check_branch
          %324 = sbr.rel (%p322) target = $region40
        $region39: #{tpu_custom_call.1} parent=15 // pred_region
          %p325 = scmp.lt.s32.totalorder %s25, 1
          %s326 = scalar_select %p325, %s25, 1
          %s327 = scalar_lea.vmem %s5, %s326
        $region40: #{tpu_custom_call.1} parent=15 // pred_fallthru
          _
        // Predicated region
        $region41: #{tpu_custom_call.1} parent=15 // pred_check
          %p328 = pneg %p205
        $region42: #{tpu_custom_call.1} parent=15 // pred_check_branch
          %330 = sbr.rel (%p328) target = $region44
        $region43: #{tpu_custom_call.1} parent=15 // pred_region
          %p331 = scmp.lt.s32.totalorder %s25, 1
          %s332 = scalar_select %p331, %s25, 1
          %s333 = smul.addr %s332, 8
          %s334 = smul.addr %s333, 4
          %s335 = scalar_lea.vmem %s6, %s334
        $region44: #{tpu_custom_call.1} parent=15 // pred_fallthru
          _
        // Predicated region
        $region45: #{tpu_custom_call.1} parent=15 // pred_check
          %p336 = pneg %p231
        $region46: #{tpu_custom_call.1} parent=15 // pred_check_branch
          %338 = sbr.rel (%p336) target = $region48
        $region47: #{tpu_custom_call.1} parent=15 // pred_region
          %p339 = scmp.lt.s32.totalorder %s25, 1
          %s340 = scalar_select %p339, %s25, 1
          %s341 = scalar_lea.vmem %s7, %s340
        $region48: #{tpu_custom_call.1} parent=15 // pred_fallthru
          _
      $region16: #{tpu_custom_call.1} parent=5 // pred_fallthru
        _
      %p342 = scmp.le.s32.totalorder 1, %s17
      %p343 = scmp.lt.s32.totalorder %s17, 5
      %p344 = pnand %p342, %p343
      %p345 = pneg %p344
      // Predicated region
      $region49: #{tpu_custom_call.1} parent=5 // pred_check
        _
      $region50: #{tpu_custom_call.1} parent=5 // pred_check_branch
        %347 = sbr.rel (%p344) target = $region52
      $region51: #{tpu_custom_call.1} parent=5 // pred_region
        %s348 = ssub.s32 %s17, 1
        %p349 = scmp.lt.s32.totalorder %s26, 1
        %s350 = scalar_select %p349, %s26, 1
        %s351 = smul.addr %s350, 2
        %s352 = smul.addr %s351, 8
        %s353 = scalar_lea.vmem %s0, %s352
        %p354 = pneg %p55
        %p355 = pneg %p52
        %p356 = scmp.lt.s32.totalorder %s26, 1
        %s357 = scalar_select %p356, %s26, 1
        %s358 = smul.addr %s357, 2
        %s359 = smul.addr %s358, 8
        %s360 = scalar_lea.vmem %s1, %s359
        %p361 = pneg %p81
        %p362 = pneg %p78
        %p363 = scmp.lt.s32.totalorder %s27, 1
        %s364 = scalar_select %p363, %s27, 1
        %s365 = smul.addr %s364, 8
        %s366 = smul.addr %s365, 4
        %s367 = scalar_lea.vmem %s2, %s366
        %p368 = pneg %p107
        %p369 = pneg %p104
        %p370 = scmp.lt.s32.totalorder %s27, 1
        %s371 = scalar_select %p370, %s27, 1
        %s372 = scalar_lea.vmem %s3, %s371
        %p373 = pneg %p133
        %p374 = pneg %p130
        %p375 = scmp.lt.s32.totalorder %s27, 1
        %s376 = scalar_select %p375, %s27, 1
        %s377 = smul.addr %s376, 8
        %s378 = smul.addr %s377, 4
        %s379 = scalar_lea.vmem %s4, %s378
        %p380 = pneg %p159
        %p381 = pneg %p156
        %p382 = scmp.lt.s32.totalorder %s27, 1
        %s383 = scalar_select %p382, %s27, 1
        %s384 = scalar_lea.vmem %s5, %s383
        %p385 = pneg %p185
        %p386 = pneg %p182
        %p387 = scmp.lt.s32.totalorder %s27, 1
        %s388 = scalar_select %p387, %s27, 1
        %s389 = smul.addr %s388, 8
        %s390 = smul.addr %s389, 4
        %s391 = scalar_lea.vmem %s6, %s390
        %p392 = pneg %p211
        %p393 = pneg %p208
        %p394 = scmp.lt.s32.totalorder %s27, 1
        %s395 = scalar_select %p394, %s27, 1
        %s396 = scalar_lea.vmem %s7, %s395
        %p397 = pneg %p237
        %p398 = pneg %p234
        %p399 = pneg %p265
        %p400 = pneg %p262
        %s401 = sand.u32 %s252, 1
        %s402 = scalar_lea.sflag [#allocation3], %s401
        %s403 = sand.u32 %s252, 1
        %s404 = smul.addr %s403, 16
        %s405 = scalar_lea.vmem [#allocation2], %s404
        %p406 = scmp.lt.s32.totalorder %s26, 1
        %s407 = scalar_select %p406, %s26, 1
        %s408 = smul.addr %s407, 2
        %s409 = smul.addr %s408, 8
        %s410 = scalar_lea.vmem %s0, %s409
        %p411 = scmp.lt.s32.totalorder %s26, 1
        %s412 = scalar_select %p411, %s26, 1
        %s413 = smul.addr %s412, 2
        %s414 = smul.addr %s413, 8
        %s415 = scalar_lea.vmem %s1, %s414
        %p416 = scmp.lt.s32.totalorder %s27, 1
        %s417 = scalar_select %p416, %s27, 1
        %s418 = smul.addr %s417, 8
        %s419 = smul.addr %s418, 4
        %s420 = scalar_lea.vmem %s2, %s419
        %p421 = scmp.lt.s32.totalorder %s27, 1
        %s422 = scalar_select %p421, %s27, 1
        %s423 = scalar_lea.vmem %s3, %s422
        %p424 = scmp.lt.s32.totalorder %s27, 1
        %s425 = scalar_select %p424, %s27, 1
        %s426 = smul.addr %s425, 8
        %s427 = smul.addr %s426, 4
        %s428 = scalar_lea.vmem %s4, %s427
        %p429 = scmp.lt.s32.totalorder %s27, 1
        %s430 = scalar_select %p429, %s27, 1
        %s431 = scalar_lea.vmem %s5, %s430
        %p432 = scmp.lt.s32.totalorder %s27, 1
        %s433 = scalar_select %p432, %s27, 1
        %s434 = smul.addr %s433, 8
        %s435 = smul.addr %s434, 4
        %s436 = scalar_lea.vmem %s6, %s435
        %p437 = scmp.lt.s32.totalorder %s27, 1
        %s438 = scalar_select %p437, %s27, 1
        %s439 = scalar_lea.vmem %s7, %s438
        %v441 = vld [vmem:[%s410] sm:$0xff]
        %v442 = vld [vmem:[%s410 + $0x8] sm:$0xff]
        %v443 = vpack.c.bf16 %v442, %v441
        %v444 = vld [vmem:[%s420] sm:$0xf]
        %v445 = vld [vmem:[%s420 + $0x4] sm:$0xf]
        %v446 = vld [vmem:[%s420 + $0x8] sm:$0xf]
        %v447 = vld [vmem:[%s420 + $0xc] sm:$0xf]
        %v448 = vld [vmem:[%s420 + $0x10] sm:$0xf]
        %v449 = vld [vmem:[%s420 + $0x14] sm:$0xf]
        %v450 = vld [vmem:[%s420 + $0x18] sm:$0xf]
        %v451 = vld [vmem:[%s420 + $0x1c] sm:$0xf]
        %v452 = vld [vmem:[%s423] sm:$0x1]
        %v454 = vperm.slane %v452, 0
        %v464 = vunpack.c.l.b16 %v444
        %v465 = vunpack.c.l.b16 %v445
        %v466 = vunpack.c.l.b16 %v446
        %v467 = vunpack.c.l.b16 %v447
        %v468 = vunpack.c.l.b16 %v448
        %v469 = vunpack.c.l.b16 %v449
        %v470 = vunpack.c.l.b16 %v450
        %v471 = vunpack.c.l.b16 %v451
        %v472 = vpack.c.b16 %v465, %v464
        %v473 = vpack.c.b16 %v467, %v466
        %v474 = vpack.c.b16 %v469, %v468
        %v475 = vpack.c.b16 %v471, %v470
        %vm480 = vcmask 523264
        %v482 = vsel %vm480, %v443, 0
        %484 = vmatpush.bf16.msra.mxu0 0
        %485 = vmatpush.bf16.msra.mxu0 0
        %486 = vmatpush.bf16.msra.mxu0 0
        %487 = vmatpush.bf16.msra.mxu0 0
        %488 = vmatpush.bf16.msra.mxu0 %v475
        %489 = vmatpush.bf16.msra.mxu0 %v474
        %490 = vmatpush.bf16.msra.mxu0 %v473
        %491 = vmatpush.bf16.msra.mxu0 %v472
        %492 = vmatmul.bf16.gmra.mxu0 %v482
        %v493 = vpop.f32.mrf.mxu0
        %v494 = vadd.f32 %v454, %v493
        %v495 = vpop.f32.mrf.mxu0
        %v496 = vadd.f32 %v454, %v495
        %497 = vdwg.mxu0
        %v498 = vld [vmem:[%s428] sm:$0xf]
        %v499 = vld [vmem:[%s428 + $0x4] sm:$0xf]
        %v500 = vld [vmem:[%s428 + $0x8] sm:$0xf]
        %v501 = vld [vmem:[%s428 + $0xc] sm:$0xf]
        %v502 = vld [vmem:[%s428 + $0x10] sm:$0xf]
        %v503 = vld [vmem:[%s428 + $0x14] sm:$0xf]
        %v504 = vld [vmem:[%s428 + $0x18] sm:$0xf]
        %v505 = vld [vmem:[%s428 + $0x1c] sm:$0xf]
        %v506 = vld [vmem:[%s431] sm:$0x1]
        %v508 = vperm.slane %v506, 0
        %v518 = vunpack.c.l.b16 %v498
        %v519 = vunpack.c.l.b16 %v499
        %v520 = vunpack.c.l.b16 %v500
        %v521 = vunpack.c.l.b16 %v501
        %v522 = vunpack.c.l.b16 %v502
        %v523 = vunpack.c.l.b16 %v503
        %v524 = vunpack.c.l.b16 %v504
        %v525 = vunpack.c.l.b16 %v505
        %v526 = vpack.c.b16 %v519, %v518
        %v527 = vpack.c.b16 %v521, %v520
        %v528 = vpack.c.b16 %v523, %v522
        %v529 = vpack.c.b16 %v525, %v524
        %534 = vmatpush.bf16.msra.mxu0 0
        %535 = vmatpush.bf16.msra.mxu0 0
        %536 = vmatpush.bf16.msra.mxu0 0
        %537 = vmatpush.bf16.msra.mxu0 0
        %538 = vmatpush.bf16.msra.mxu0 %v529
        %539 = vmatpush.bf16.msra.mxu0 %v528
        %540 = vmatpush.bf16.msra.mxu0 %v527
        %541 = vmatpush.bf16.msra.mxu0 %v526
        %542 = vmatmul.bf16.gmra.mxu0 %v482
        %v543 = vpop.f32.mrf.mxu0
        %v544 = vadd.f32 %v508, %v543
        %v545 = vpop.f32.mrf.mxu0
        %v546 = vadd.f32 %v508, %v545
        %547 = vdwg.mxu0
        %v548 = vld [vmem:[%s436] sm:$0xf]
        %v549 = vld [vmem:[%s436 + $0x4] sm:$0xf]
        %v550 = vld [vmem:[%s436 + $0x8] sm:$0xf]
        %v551 = vld [vmem:[%s436 + $0xc] sm:$0xf]
        %v552 = vld [vmem:[%s436 + $0x10] sm:$0xf]
        %v553 = vld [vmem:[%s436 + $0x14] sm:$0xf]
        %v554 = vld [vmem:[%s436 + $0x18] sm:$0xf]
        %v555 = vld [vmem:[%s436 + $0x1c] sm:$0xf]
        %v556 = vld [vmem:[%s439] sm:$0x1]
        %v558 = vperm.slane %v556, 0
        %v568 = vunpack.c.l.b16 %v548
        %v569 = vunpack.c.l.b16 %v549
        %v570 = vunpack.c.l.b16 %v550
        %v571 = vunpack.c.l.b16 %v551
        %v572 = vunpack.c.l.b16 %v552
        %v573 = vunpack.c.l.b16 %v553
        %v574 = vunpack.c.l.b16 %v554
        %v575 = vunpack.c.l.b16 %v555
        %v576 = vpack.c.b16 %v569, %v568
        %v577 = vpack.c.b16 %v571, %v570
        %v578 = vpack.c.b16 %v573, %v572
        %v579 = vpack.c.b16 %v575, %v574
        %584 = vmatpush.bf16.msra.mxu0 0
        %585 = vmatpush.bf16.msra.mxu0 0
        %586 = vmatpush.bf16.msra.mxu0 0
        %587 = vmatpush.bf16.msra.mxu0 0
        %588 = vmatpush.bf16.msra.mxu0 %v579
        %589 = vmatpush.bf16.msra.mxu0 %v578
        %590 = vmatpush.bf16.msra.mxu0 %v577
        %591 = vmatpush.bf16.msra.mxu0 %v576
        %592 = vmatmul.bf16.gmra.mxu0 %v482
        %v593 = vpop.f32.mrf.mxu0
        %v594 = vadd.f32 %v558, %v593
        %v595 = vpop.f32.mrf.mxu0
        %v596 = vadd.f32 %v558, %v595
        %597 = vdwg.mxu0
        %v598 = vpack.c.bf16 %v496, %v494
        %v599 = vpack.c.bf16 %v546, %v544
        %vm600 = vcmask 261120
        %v602 = vsel %vm600, %v598, 0
        %v605 = vsel %vm600, %v599, 0
        %607 = vmatpush.bf16.xpose.msra.mxu0 0
        %608 = vmatpush.bf16.xpose.msra.mxu0 0
        %609 = vmatpush.bf16.xpose.msra.mxu0 0
        %610 = vmatpush.bf16.xpose.msra.mxu0 0
        %611 = vmatpush.bf16.xpose.msra.mxu0 0
        %612 = vmatpush.bf16.xpose.msra.mxu0 0
        %613 = vmatpush.bf16.xpose.msra.mxu0 0
        %614 = vmatpush.bf16.xpose.msra.mxu0 %v605
        %615 = vmatmul.bf16.gmra.mxu0 %v602
        %v616 = vpop.f32.mrf.mxu0
        %v617 = vadd.f32 0.0, %v616
        %v618 = vpop.f32.mrf.mxu0
        %v619 = vadd.f32 0.0, %v618
        %620 = vdwg.mxu0
        %v621 = vmul.f32 %v617, 0.17677669
        %v622 = vmul.f32 %v619, 0.17677669
        %v623 = vld [vmem:[%s415] sm:$0xff]
        %v624 = vld [vmem:[%s415 + $0x8] sm:$0xff]
        %v625 = vadd.f32 %v621, %v623
        %v626 = vadd.f32 %v622, %v624
        %vm627 = vcmask 130048
        %v628 = vsel %vm627, %v625, -inf
        %629 = vmax.xlane.f32.xlu0 %v628
        %v630 = vpop.xlane.xlu0 %629
        %v631 = vsel %vm627, %v626, -inf
        %632 = vmax.xlane.f32.xlu0 %v631
        %v633 = vpop.xlane.xlu0 %632
        %v634 = vsub.f32 %v625, %v630
        %v635 = vsub.f32 %v626, %v633
        %v636 = vmul.f32 %v634, 1.442695
        %v637 = vpow.pop %v636
        %v638 = vmul.f32 %v635, 1.442695
        %v639 = vpow.pop %v638
        %v640 = vsel %vm627, %v637, 0.0
        %641 = vadd.xlane.f32.xlu0 %v640
        %v642 = vpop.xlane.xlu0 %641
        %v643 = vsel %vm627, %v639, 0.0
        %644 = vadd.xlane.f32.xlu0 %v643
        %v645 = vpop.xlane.xlu0 %644
        %v646 = vrcp.pop %v642
        %v647 = vmul.f32 %v642, %v646
        %v648 = vsub.f32 1.0, %v647
        %v649 = vmul.f32 %v646, %v648
        %v650 = vadd.f32 %v646, %v649
        %vm651 = vweird.f32 %v642
        %vm652 = vweird.f32 %v646
        %vm653 = vmor %vm651, %vm652
        %v654 = vsel %vm653, %v646, %v650
        %v655 = vand.u32 2147483647, %v642
        %vm656 = vcmp.eq.f32.partialorder %v655, 8.507059e+37
        %v657 = vand.u32 %v642, 2147483648
        %v658 = vor.u32 1.1754944e-38, %v657
        %v659 = vsel %vm656, %v658, %v654
        %v660 = vmul.f32 %v637, %v659
        %v661 = vrcp.pop %v645
        %v662 = vmul.f32 %v645, %v661
        %v663 = vsub.f32 1.0, %v662
        %v664 = vmul.f32 %v661, %v663
        %v665 = vadd.f32 %v661, %v664
        %vm666 = vweird.f32 %v645
        %vm667 = vweird.f32 %v661
        %vm668 = vmor %vm666, %vm667
        %v669 = vsel %vm668, %v661, %v665
        %v670 = vand.u32 2147483647, %v645
        %vm671 = vcmp.eq.f32.partialorder %v670, 8.507059e+37
        %v672 = vand.u32 %v645, 2147483648
        %v673 = vor.u32 1.1754944e-38, %v672
        %v674 = vsel %vm671, %v673, %v669
        %v675 = vmul.f32 %v639, %v674
        %v676 = vpack.c.bf16 %v675, %v660
        %v677 = vpack.c.bf16 %v596, %v594
        %v679 = vsel %vm627, %v676, 0
        %681 = vmatpush.bf16.msra.mxu0 0
        %682 = vmatpush.bf16.msra.mxu0 0
        %683 = vmatpush.bf16.msra.mxu0 0
        %684 = vmatpush.bf16.msra.mxu0 0
        %685 = vmatpush.bf16.msra.mxu0 0
        %686 = vmatpush.bf16.msra.mxu0 0
        %687 = vmatpush.bf16.msra.mxu0 0
        %688 = vmatpush.bf16.msra.mxu0 %v677
        %689 = vmatmul.bf16.gmra.mxu0 %v679
        %v690 = vpop.f32.mrf.mxu0
        %v691 = vadd.f32 0.0, %v690
        %v692 = vpop.f32.mrf.mxu0
        %v693 = vadd.f32 0.0, %v692
        %694 = vdwg.mxu0
        %695 = vst.msk [vmem:[%s405] sm:$0xff] %vm600, %v691
        %696 = vst.msk [vmem:[%s405 + $0x8] sm:$0xff] %vm600, %v693
        %s697 = sand.u32 %s252, 1
        %s698 = scalar_lea.sflag [#allocation3], %s697
        %s699 = sand.u32 %s252, 1
        %s700 = smul.addr %s699, 16
        %s701 = scalar_lea.vmem [#allocation2], %s700
        // Predicated region
        $region53: #{tpu_custom_call.1} parent=51 // pred_check
          %p702 = pneg %p262
        $region54: #{tpu_custom_call.1} parent=51 // pred_check_branch
          %704 = sbr.rel (%p702) target = $region56
        $region55: #{tpu_custom_call.1} parent=51 // pred_region
          %706 = vsyncadd %s698, 0
          %s707 = smul.addr %s27, 2
          %s708 = smul.addr %s26, 4
          %s709 = sadd.s32 %s707, %s708
          %s710 = smul.addr %s709, 8
          %s711 = scalar_lea.hbm %s8, %s710
          %s712 = sshll.u32 %s701, 4
          %s713 = int_to_ptr.vmem [resolvable:$true] %s712
          %s714 = sshll.u32 %s711, 4
          %s715 = int_to_ptr.hbm [resolvable:$true] %s714
          %720 = dma.vmem_to_hbm [thread:$0]  %s713, 256, %s715, %s698, 128, 128, 8
        $region56: #{tpu_custom_call.1} parent=51 // pred_fallthru
          _
      $region52: #{tpu_custom_call.1} parent=5 // pred_fallthru
        _
      %p721 = scmp.le.s32.totalorder 2, %s17
      // Predicated region
      $region57: #{tpu_custom_call.1} parent=5 // pred_check
        %p722 = pneg %p721
      $region58: #{tpu_custom_call.1} parent=5 // pred_check_branch
        %724 = sbr.rel (%p722) target = $region60
      $region59: #{tpu_custom_call.1} parent=5 // pred_region
        %s725 = ssub.s32 %s17, 2
        // Predicated region
        $region61: #{tpu_custom_call.1} parent=59 // pred_check
          %p726 = pneg %p268
        $region62: #{tpu_custom_call.1} parent=59 // pred_check_branch
          %728 = sbr.rel (%p726) target = $region64
        $region63: #{tpu_custom_call.1} parent=59 // pred_region
          %s729 = sand.u32 %s253, 1
          %s730 = scalar_lea.sflag [#allocation3], %s729
          %s731 = sand.u32 %s253, 1
          %s732 = smul.addr %s731, 16
          %s733 = scalar_lea.vmem [#allocation2], %s732
          %735 = dma.done %s730, 256
        $region64: #{tpu_custom_call.1} parent=59 // pred_fallthru
          _
      $region60: #{tpu_custom_call.1} parent=5 // pred_fallthru
        _
    $region6: #{tpu_custom_call.1} parent=1 // loop_footer
      %s21 = sadd.s32 1, %s17
    $region7: #{tpu_custom_call.1} parent=1 // loop_footer_branch
      %16 = sbr.rel target = $region3
    $region8: #{tpu_custom_call.1} parent=1 // loop_exit
      _
    %736 = vsyncpa [#allocation3], 1
    %s737 = scalar_lea.sflag [#allocation3], 1
    %738 = vsyncpa %s737, 1

</llo_original>
